<compile_context>
chip_gen: v6e
topology: v6e:2x2x1
jax: 0.10.0
libtpu: 0.0.40
codegen_flags: <defaults>
</compile_context>

<pallas_src>
import jax
import jax.numpy as jnp
import numpy as np
from jax import lax
from jax.experimental import pallas as pl
from jax.experimental.pallas import tpu as pltpu


def _make_decoder_kernel(B_tile, T_in, C_in, n_phase, cs):
    """ConvTranspose1d tile kernel.

    One grid step handles `B_tile` batch elements:
      x_ref : (B_tile, T_in, C_in)               time-major activations
      w_ref : (C_in, n_phase * cs)               weight, lanes ordered (phase, c_out, r)
      o_ref : (B_tile, T_in + n_phase - 1, cs)   un-cropped overlap-add blocks,
                                                 lanes ordered (c_out, r), r in [0, stride)
    """
    M = B_tile * T_in

    def kernel(x_ref, w_ref, o_ref):
        # Single fused MXU matmul: contraction over C_in; all output channels and
        # kernel taps live in the lane (N) dimension.
        x2d = x_ref[...].reshape(M, C_in)
        contrib = jnp.dot(x2d, w_ref[...], preferred_element_type=jnp.float32)
        c3 = contrib.reshape(B_tile, T_in, n_phase * cs)

        # Vectorized overlap-add: phase p of input frame t contributes to output
        # block (t + p).  Each phase is one static lane-slice + one sublane-shifted
        # add; no per-frame RMW, no scratch.
        acc = None
        for p in range(n_phase):
            hp = c3[:, :, p * cs:(p + 1) * cs]                  # (B_tile, T_in, cs)
            pieces = []
            if p > 0:
                pieces.append(jnp.zeros((B_tile, p, cs), jnp.float32))
            pieces.append(hp)
            if n_phase - 1 - p > 0:
                pieces.append(jnp.zeros((B_tile, n_phase - 1 - p, cs), jnp.float32))
            shifted = pieces[0] if len(pieces) == 1 else jnp.concatenate(pieces, axis=1)
            acc = shifted if acc is None else acc + shifted

        # One dense, offset-0 store of the whole block.
        o_ref[...] = acc.astype(o_ref.dtype)

    return kernel


def _pick_batch_tile(N, T_in, target_rows=256):
    """Fold batch into the matmul M dimension (target ~256 rows), but keep at
    least 2 grid steps whenever N >= 2 so both v7x TensorCores get work."""
    bt = max(1, min(N, target_rows // max(T_in, 1)))
    if N >= 2:
        bt = min(bt, -(-N // 2))        # ceil(N/2)  =>  >= 2 grid steps
    return bt


def conv_transpose1d_pallas(x, weight, *, stride, padding, compute_dtype=None):
    """x: (N, C_in, T_in), weight: (C_in, C_out, L) — PyTorch ConvTranspose1d layout.

    compute_dtype: optionally jnp.bfloat16 on v6e/v7x (f32 accumulation is kept);
    default None keeps f32 matmul inputs.
    """
    N, C_in, T_in = x.shape
    _, C_out, L = weight.shape
    T_out = (T_in - 1) * stride - 2 * padding + L

    n_phase = -(-L // stride)            # ceil(L / stride); == 2 for stride = L // 2
    L_pad = n_phase * stride             # zero-pad taps so every phase is stride-wide
    cs = C_out * stride                  # lanes per output block: (c_out, r)
    K_blocks = T_in + n_phase - 1
    F = n_phase * cs

    # ---- wrapper-side layout prep (cheap XLA ops on HBM) ----
    x_t = jnp.transpose(x, (0, 2, 1))                              # (N, T_in, C_in)
    w_pad = weight if L_pad == L else jnp.pad(
        weight, ((0, 0), (0, 0), (0, L_pad - L)))
    w2d = jnp.transpose(w_pad.reshape(C_in, C_out, n_phase, stride),
                        (0, 2, 1, 3)).reshape(C_in, F)             # (C_in, P*C_out*stride)

    if compute_dtype is not None:
        x_t = x_t.astype(compute_dtype)
        w2d = w2d.astype(compute_dtype)

    B_tile = _pick_batch_tile(N, T_in)
    n_tiles = -(-N // B_tile)
    N_pad = n_tiles * B_tile
    if N_pad != N:
        x_t = jnp.concatenate(
            [x_t, jnp.zeros((N_pad - N, T_in, C_in), x_t.dtype)], axis=0)

    kernel = _make_decoder_kernel(B_tile, T_in, C_in, n_phase, cs)

    cost = pl.CostEstimate(
        flops=2 * N_pad * T_in * C_in * F,
        transcendentals=0,
        bytes_accessed=(x_t.size * x_t.dtype.itemsize
                        + w2d.size * w2d.dtype.itemsize
                        + N_pad * K_blocks * cs * x.dtype.itemsize),
    )

    full = pl.pallas_call(
        kernel,
        out_shape=jax.ShapeDtypeStruct((N_pad, K_blocks, cs), x.dtype),
        grid_spec=pltpu.PrefetchScalarGridSpec(
            num_scalar_prefetch=0,
            grid=(n_tiles,),
            in_specs=[
                pl.BlockSpec((B_tile, T_in, C_in), lambda i: (i, 0, 0)),
                pl.BlockSpec((C_in, F), lambda i: (0, 0)),
            ],
            out_specs=pl.BlockSpec((B_tile, K_blocks, cs), lambda i: (i, 0, 0)),
        ),
        compiler_params=pltpu.CompilerParams(dimension_semantics=("parallel",)),
        cost_estimate=cost,
    )(x_t, w2d)

    # ---- wrapper-side crop / relayout back to PyTorch NCL (cheap XLA ops) ----
    full = full[:N]                                                # drop batch padding
    y = full.reshape(N, K_blocks, C_out, stride)
    y = jnp.transpose(y, (0, 2, 1, 3)).reshape(N, C_out, K_blocks * stride)
    return y[:, :, padding:padding + T_out]


def conv_transpose1d_ref(x, weight, stride, padding):
    """Pure-JAX reference (lhs-dilated conv) matching PyTorch ConvTranspose1d."""
    C_in, C_out, L = weight.shape
    w_flip = weight[:, :, ::-1]                 # flip along kernel axis
    rhs = jnp.transpose(w_flip, (1, 0, 2))      # (C_out, C_in, L) -> OIH
    pad_amt = L - 1 - padding
    return lax.conv_general_dilated(
        x, rhs,
        window_strides=(1,),
        padding=[(pad_amt, pad_amt)],
        lhs_dilation=(stride,),
        dimension_numbers=("NCH", "OIH", "NCH"),
    )


class DecoderPallas:
    """Mirror of the PyTorch Decoder module, weights initialized in-script."""

    def __init__(self, hyper_params=False, key=None):
        if hyper_params is False:
            self.hyper_params = {'N': 128, 'L': 40000 // 1000, 'B': 128, 'H': 256,
                                 'Sc': 128, 'P': 3, 'X': 7, 'R': 2}
        else:
            self.hyper_params = hyper_params
        H = self.hyper_params['H']
        L = self.hyper_params['L']
        self.stride = L // 2
        self.padding = 10
        if key is None:
            key = jax.random.PRNGKey(0)
        # PyTorch ConvTranspose1d weight shape: (in_channels, out_channels, kernel)
        self.weight = (jax.random.normal(key, (H, 2, L), dtype=jnp.float32) * 0.02)

    def __call__(self, input_tensor):
        # On v6e/v7x, compute_dtype=jnp.bfloat16 feeds the MXU at native rate
        # (f32 accumulation kept); default f32 preserves exact-accuracy checks.
        return conv_transpose1d_pallas(
            input_tensor, self.weight, stride=self.stride, padding=self.padding
        )


if __name__ == "__main__":
    key = jax.random.PRNGKey(0)
    kx, kw = jax.random.split(key)

    dec = DecoderPallas(key=kw)
    H = dec.hyper_params['H']      # 256 input channels
    batch, T_in = 2, 8             # small input sequence

    x = jax.random.normal(kx, (batch, H, T_in), dtype=jnp.float32)

    out = jax.block_until_ready(dec(x))

    T_out = (T_in - 1) * dec.stride - 2 * dec.padding + dec.hyper_params['L']
    assert out.shape == (batch, 2, T_out), out.shape

    ref = conv_transpose1d_ref(x, dec.weight, dec.stride, dec.padding)
    np.testing.assert_allclose(np.asarray(out), np.asarray(ref), rtol=1e-4, atol=1e-4)

    print("KERNEL_OK")
</pallas_src>

<mosaic_0001>
module attributes {stable_mosaic.version = 11 : i64} {
  func.func @kernel(%arg0: i32, %arg1: memref<1x8x256xf32, #tpu.memory_space<vmem>>, %arg2: memref<256x80xf32, #tpu.memory_space<vmem>>, %arg3: memref<1x9x40xf32, #tpu.memory_space<vmem>>) attributes {dimension_semantics = [#tpu.dimension_semantics<parallel>], iteration_bounds = array<i64: 2>, scalar_prefetch = 0 : i64, scratch_operands = 0 : i64, tpu.core_type = #tpu.core_type<tc>, window_params = [{transform_indices = @transform_0, window_bounds = array<i64: 1, 8, 256>}, {pipeline_mode = #tpu.pipeline_mode<synchronous>, transform_indices = @transform_1, window_bounds = array<i64: 256, 80>}, {transform_indices = @transform_2, window_bounds = array<i64: 1, 9, 40>}]} {
    %c0 = arith.constant 0 : index
    %c0_0 = arith.constant 0 : index
    %c0_1 = arith.constant 0 : index
    %0 = vector.load %arg1[%c0, %c0_0, %c0_1] : memref<1x8x256xf32, #tpu.memory_space<vmem>>, vector<1x8x256xf32>
    %1 = vector.shape_cast %0 : vector<1x8x256xf32> to vector<8x256xf32>
    %c0_2 = arith.constant 0 : index
    %c0_3 = arith.constant 0 : index
    %2 = vector.load %arg2[%c0_2, %c0_3] : memref<256x80xf32, #tpu.memory_space<vmem>>, vector<256x80xf32>
    %cst = arith.constant dense<0.000000e+00> : vector<8x80xf32>
    %3 = tpu.matmul %1, %2, %cst {dimension_numbers = #tpu.dot_dimension_numbers<[1], [0], [0], [1], [0, 0, 1, 1], [], []>} : vector<8x256xf32>, vector<256x80xf32>, vector<8x80xf32> -> vector<8x80xf32>
    %4 = vector.shape_cast %3 : vector<8x80xf32> to vector<1x8x80xf32>
    %5 = vector.extract_strided_slice %4 {offsets = [0, 0, 0], sizes = [1, 8, 40], strides = [1, 1, 1]} : vector<1x8x80xf32> to vector<1x8x40xf32>
    %cst_4 = arith.constant 0.000000e+00 : f32
    %6 = vector.broadcast %cst_4 : f32 to vector<1x1x40xf32>
    %7 = tpu.concatenate %5, %6 in 1 : vector<1x8x40xf32>, vector<1x1x40xf32> -> vector<1x9x40xf32>
    %8 = vector.extract_strided_slice %4 {offsets = [0, 0, 40], sizes = [1, 8, 40], strides = [1, 1, 1]} : vector<1x8x80xf32> to vector<1x8x40xf32>
    %cst_5 = arith.constant 0.000000e+00 : f32
    %9 = vector.broadcast %cst_5 : f32 to vector<1x1x40xf32>
    %10 = tpu.concatenate %9, %8 in 1 : vector<1x1x40xf32>, vector<1x8x40xf32> -> vector<1x9x40xf32>
    %11 = arith.addf %7, %10 : vector<1x9x40xf32>
    %c0_6 = arith.constant 0 : index
    %c0_7 = arith.constant 0 : index
    %c0_8 = arith.constant 0 : index
    %12 = vector.load %arg3[%c0_6, %c0_7, %c0_8] : memref<1x9x40xf32, #tpu.memory_space<vmem>>, vector<1x9x40xf32>
    tpu.vector_store %arg3[%c0_6, %c0_7, %c0_8], %11 {strides = array<i32>} : memref<1x9x40xf32, #tpu.memory_space<vmem>>, vector<1x9x40xf32>,
    return
  }
  func.func @transform_0(%arg0: i32) -> (i32, i32, i32) {
    %c0_i32 = arith.constant 0 : i32
    %c0_i32_0 = arith.constant 0 : i32
    %c0_i32_1 = arith.constant 0 : i32
    return %arg0, %c0_i32, %c0_i32_0 : i32, i32, i32
  }
  func.func @transform_1(%arg0: i32) -> (i32, i32) {
    %c0_i32 = arith.constant 0 : i32
    %c0_i32_0 = arith.constant 0 : i32
    %c0_i32_1 = arith.constant 0 : i32
    return %c0_i32, %c0_i32_0 : i32, i32
  }
  func.func @transform_2(%arg0: i32) -> (i32, i32, i32) {
    %c0_i32 = arith.constant 0 : i32
    %c0_i32_0 = arith.constant 0 : i32
    %c0_i32_1 = arith.constant 0 : i32
    return %arg0, %c0_i32, %c0_i32_0 : i32, i32, i32
  }
}

</mosaic_0001>

<llo_original>
// kernel: tpu_custom_call.1
$region0: #{tpu_custom_call.1}
  #allocation0 [shape = 'u32[]', space=smem, size = 0x4, offset = 0x4, fixed_abs, tag = 'smem constant byte address 0x4 - core index']
  #allocation1 [shape = 'u32[144,128]{1,0:T(1,128)}', space=vmem, size = 0x12000, scoped, tag = 'internal scratch']
  %s0 = inlined_call_operand.vmem [shape: f32[2,8,256], index: 0, kind: input, shape index: {}]
  %s1 = inlined_call_operand.vmem [shape: f32[256,80], index: 1, kind: input, shape index: {}]
  %s2 = inlined_call_operand.vmem [shape: f32[2,9,40], index: 2, kind: output, shape index: {}]
  %s3 = sld [smem:[#allocation0]]
  $region41: #{tpu_custom_call.1} parent=0
    _
  %s5 = ssub.s32 1, %s3
  %s6 = scalar_select 0, %s5, %s3
  loop: start=0, step=1, limit=4
  $region2: #{tpu_custom_call.1} parent=0 // loop_pre_header
    _
  $region3: #{tpu_custom_call.1} parent=0 // loop_header
    %s8 = sphi 0, %s12
    %p9 = scmp.ge.s32.totalorder %s8, 4
    %s18 = sphi 0, %s20
    %s21 = sphi 0, %s18
    %s22 = sphi 0, %s21
    %s38 = sphi 0, %s22
    %s42 = sphi 0, %s42
    %s44 = sphi 0, %s42
    %s45 = sphi 0, %s44
    %s59 = sphi 0, %s45
    %s65 = sphi 0, %s67
    %s68 = sphi 0, %s65
    %s69 = sphi 0, %s68
    %s85 = sphi 0, %s69
  $region4: #{tpu_custom_call.1} parent=0 // loop_header_branch
    %11 = sbr.rel (%p9) target = $region8
  $region5: #{tpu_custom_call.1} parent=0 // loop_body
    %s13 = ssub.s32 %s8, 1
    %s14 = ssub.s32 %s8, 2
    %s15 = sadd.s32 %s8, 1
    %s16 = ssub.s32 %s8, %s15
    %p17 = scmp.eq.s32.totalorder %s16, 0
    %s19 = sadd.s32 %s18, 1
    %s20 = scalar_select %p17, %s18, %s19
    %p23 = pneg %p17
    %p24 = scmp.eq.s32.totalorder %s8, 1
    %p25 = por %p23, %p24
    %p26 = scmp.ne.s32.totalorder %s18, %s21
    %p27 = scmp.eq.s32.totalorder %s8, 0
    %p28 = por %p26, %p27
    %p29 = scmp.ne.s32.totalorder %s18, %s21
    %p30 = scmp.eq.s32.totalorder %s13, 1
    %p31 = por %p29, %p30
    %p32 = scmp.ne.s32.totalorder %s21, %s22
    %p33 = scmp.eq.s32.totalorder %s13, 0
    %p34 = por %p32, %p33
    %p35 = scmp.ne.s32.totalorder %s21, %s22
    %p36 = scmp.eq.s32.totalorder %s14, 1
    %p37 = por %p35, %p36
    %p39 = scmp.ne.s32.totalorder %s22, %s38
    %p40 = scmp.eq.s32.totalorder %s14, 0
    %p41 = por %p39, %p40
    %s43 = sadd.s32 %s42, 1
    %p46 = scmp.eq.s32.totalorder %s8, 1
    %p47 = scmp.ne.s32.totalorder %s42, %s44
    %p48 = scmp.eq.s32.totalorder %s8, 0
    %p49 = por %p47, %p48
    %p50 = scmp.ne.s32.totalorder %s42, %s44
    %p51 = scmp.eq.s32.totalorder %s13, 1
    %p52 = por %p50, %p51
    %p53 = scmp.ne.s32.totalorder %s44, %s45
    %p54 = scmp.eq.s32.totalorder %s13, 0
    %p55 = por %p53, %p54
    %p56 = scmp.ne.s32.totalorder %s44, %s45
    %p57 = scmp.eq.s32.totalorder %s14, 1
    %p58 = por %p56, %p57
    %p60 = scmp.ne.s32.totalorder %s45, %s59
    %p61 = scmp.eq.s32.totalorder %s14, 0
    %p62 = por %p60, %p61
    %s63 = ssub.s32 %s8, %s15
    %p64 = scmp.eq.s32.totalorder %s63, 0
    %s66 = sadd.s32 %s65, 1
    %s67 = scalar_select %p64, %s65, %s66
    %p70 = pneg %p64
    %p71 = scmp.eq.s32.totalorder %s8, 1
    %p72 = por %p70, %p71
    %p73 = scmp.ne.s32.totalorder %s65, %s68
    %p74 = scmp.eq.s32.totalorder %s8, 0
    %p75 = por %p73, %p74
    %p76 = scmp.ne.s32.totalorder %s65, %s68
    %p77 = scmp.eq.s32.totalorder %s13, 1
    %p78 = por %p76, %p77
    %p79 = scmp.ne.s32.totalorder %s68, %s69
    %p80 = scmp.eq.s32.totalorder %s13, 0
    %p81 = por %p79, %p80
    %p82 = scmp.ne.s32.totalorder %s68, %s69
    %p83 = scmp.eq.s32.totalorder %s14, 1
    %p84 = por %p82, %p83
    %p86 = scmp.ne.s32.totalorder %s69, %s85
    %p87 = scmp.eq.s32.totalorder %s14, 0
    %p88 = por %p86, %p87
    %p89 = scmp.le.s32.totalorder 1, %s8
    %p90 = scmp.lt.s32.totalorder %s8, 3
    %p91 = pnand %p89, %p90
    %p92 = pneg %p91
    // Predicated region
    $region9: #{tpu_custom_call.1} parent=5 // pred_check
      _
    $region10: #{tpu_custom_call.1} parent=5 // pred_check_branch
      %94 = sbr.rel (%p91) target = $region12
    $region11: #{tpu_custom_call.1} parent=5 // pred_region
      %s95 = ssub.s32 %s8, 1
      // Predicated region
      $region13: #{tpu_custom_call.1} parent=11 // pred_check
        %p96 = pneg %p55
      $region14: #{tpu_custom_call.1} parent=11 // pred_check_branch
        %98 = sbr.rel (%p96) target = $region16
      $region15: #{tpu_custom_call.1} parent=11 // pred_region
        _
      $region16: #{tpu_custom_call.1} parent=11 // pred_fallthru
        _
    $region12: #{tpu_custom_call.1} parent=5 // pred_fallthru
      _
    %p99 = scmp.lt.s32.totalorder %s8, 2
    // Predicated region
    $region17: #{tpu_custom_call.1} parent=5 // pred_check
      %p100 = pneg %p99
    $region18: #{tpu_custom_call.1} parent=5 // pred_check_branch
      %102 = sbr.rel (%p100) target = $region20
    $region19: #{tpu_custom_call.1} parent=5 // pred_region
      // Predicated region
      $region21: #{tpu_custom_call.1} parent=19 // pred_check
        %p103 = pneg %p28
      $region22: #{tpu_custom_call.1} parent=19 // pred_check_branch
        %105 = sbr.rel (%p103) target = $region24
      $region23: #{tpu_custom_call.1} parent=19 // pred_region
        %p106 = scmp.lt.s32.totalorder %s8, 1
        %s107 = scalar_select %p106, %s8, 1
        %s108 = smul.addr %s107, 2
        %s109 = smul.addr %s108, 8
        %s110 = scalar_lea.vmem %s0, %s109
      $region24: #{tpu_custom_call.1} parent=19 // pred_fallthru
        _
    $region20: #{tpu_custom_call.1} parent=5 // pred_fallthru
      _
    %p111 = scmp.le.s32.totalorder 1, %s8
    %p112 = scmp.lt.s32.totalorder %s8, 3
    %p113 = pnand %p111, %p112
    %p114 = pneg %p113
    // Predicated region
    $region25: #{tpu_custom_call.1} parent=5 // pred_check
      _
    $region26: #{tpu_custom_call.1} parent=5 // pred_check_branch
      %116 = sbr.rel (%p113) target = $region28
    $region27: #{tpu_custom_call.1} parent=5 // pred_region
      %s117 = ssub.s32 %s8, 1
      %p118 = scmp.lt.s32.totalorder %s13, 1
      %s119 = scalar_select %p118, %s13, 1
      %s120 = smul.addr %s119, 2
      %s121 = smul.addr %s120, 8
      %s122 = scalar_lea.vmem %s0, %s121
      %p123 = pneg %p34
      %p124 = pneg %p31
      %p125 = pneg %p55
      %p126 = pneg %p52
      %p127 = pneg %p81
      %p128 = pneg %p78
      %p129 = scmp.lt.s32.totalorder %s13, 1
      %s130 = scalar_select %p129, %s13, 1
      %s131 = smul.addr %s130, 2
      %s132 = smul.addr %s131, 8
      %s133 = scalar_lea.vmem %s2, %s132
      %p134 = scmp.lt.s32.totalorder %s13, 1
      %s135 = scalar_select %p134, %s13, 1
      %s136 = smul.addr %s135, 2
      %s137 = smul.addr %s136, 8
      %s138 = scalar_lea.vmem %s0, %s137
      %p139 = scmp.lt.s32.totalorder %s13, 1
      %s140 = scalar_select %p139, %s13, 1
      %s141 = smul.addr %s140, 2
      %s142 = smul.addr %s141, 8
      %s143 = scalar_lea.vmem %s2, %s142
      %v144 = vld [vmem:[%s138] sm:$0xff]
      %v145 = vld [vmem:[%s138 + $0x8] sm:$0xff]
      %v146 = vld [vmem:[%s1] sm:$0xff]
      %v147 = vld [vmem:[%s1 + $0x8] sm:$0xff]
      %v148 = vld [vmem:[%s1 + $0x10] sm:$0xff]
      %v149 = vld [vmem:[%s1 + $0x18] sm:$0xff]
      %v150 = vld [vmem:[%s1 + $0x20] sm:$0xff]
      %v151 = vld [vmem:[%s1 + $0x28] sm:$0xff]
      %v152 = vld [vmem:[%s1 + $0x30] sm:$0xff]
      %v153 = vld [vmem:[%s1 + $0x38] sm:$0xff]
      %v154 = vld [vmem:[%s1 + $0x40] sm:$0xff]
      %v155 = vld [vmem:[%s1 + $0x48] sm:$0xff]
      %v156 = vld [vmem:[%s1 + $0x50] sm:$0xff]
      %v157 = vld [vmem:[%s1 + $0x58] sm:$0xff]
      %v158 = vld [vmem:[%s1 + $0x60] sm:$0xff]
      %v159 = vld [vmem:[%s1 + $0x68] sm:$0xff]
      %v160 = vld [vmem:[%s1 + $0x70] sm:$0xff]
      %v161 = vld [vmem:[%s1 + $0x78] sm:$0xff]
      %v162 = vld [vmem:[%s1 + $0x80] sm:$0xff]
      %v163 = vld [vmem:[%s1 + $0x88] sm:$0xff]
      %v164 = vld [vmem:[%s1 + $0x90] sm:$0xff]
      %v165 = vld [vmem:[%s1 + $0x98] sm:$0xff]
      %v166 = vld [vmem:[%s1 + $0xa0] sm:$0xff]
      %v167 = vld [vmem:[%s1 + $0xa8] sm:$0xff]
      %v168 = vld [vmem:[%s1 + $0xb0] sm:$0xff]
      %v169 = vld [vmem:[%s1 + $0xb8] sm:$0xff]
      %v170 = vld [vmem:[%s1 + $0xc0] sm:$0xff]
      %v171 = vld [vmem:[%s1 + $0xc8] sm:$0xff]
      %v172 = vld [vmem:[%s1 + $0xd0] sm:$0xff]
      %v173 = vld [vmem:[%s1 + $0xd8] sm:$0xff]
      %v174 = vld [vmem:[%s1 + $0xe0] sm:$0xff]
      %v175 = vld [vmem:[%s1 + $0xe8] sm:$0xff]
      %v176 = vld [vmem:[%s1 + $0xf0] sm:$0xff]
      %v177 = vld [vmem:[%s1 + $0xf8] sm:$0xff]
      %178 = vmatprep.subr.mxu0 0.0
      %179 = vmatpush1.msra.mxu0 %v161
      %180 = vmatprep.subr.mxu0 0.0
      %181 = vmatpush1.msra.mxu0 %v160
      %182 = vmatprep.subr.mxu0 0.0
      %183 = vmatpush1.msra.mxu0 %v159
      %184 = vmatprep.subr.mxu0 0.0
      %185 = vmatpush1.msra.mxu0 %v158
      %186 = vmatprep.subr.mxu0 0.0
      %187 = vmatpush1.msra.mxu0 %v157
      %188 = vmatprep.subr.mxu0 0.0
      %189 = vmatpush1.msra.mxu0 %v156
      %190 = vmatprep.subr.mxu0 0.0
      %191 = vmatpush1.msra.mxu0 %v155
      %192 = vmatprep.subr.mxu0 0.0
      %193 = vmatpush1.msra.mxu0 %v154
      %194 = vmatprep.subr.mxu0 0.0
      %195 = vmatpush1.msra.mxu0 %v153
      %196 = vmatprep.subr.mxu0 0.0
      %197 = vmatpush1.msra.mxu0 %v152
      %198 = vmatprep.subr.mxu0 0.0
      %199 = vmatpush1.msra.mxu0 %v151
      %200 = vmatprep.subr.mxu0 0.0
      %201 = vmatpush1.msra.mxu0 %v150
      %202 = vmatprep.subr.mxu0 0.0
      %203 = vmatpush1.msra.mxu0 %v149
      %204 = vmatprep.subr.mxu0 0.0
      %205 = vmatpush1.msra.mxu0 %v148
      %206 = vmatprep.subr.mxu0 0.0
      %207 = vmatpush1.msra.mxu0 %v147
      %208 = vmatprep.subr.mxu0 0.0
      %209 = vmatpush1.msra.mxu0 %v146
      %210 = vmatprep.subr.mxu0 0.0
      %211 = vmatpush2.msra.mxu0 %v177
      %212 = vmatprep.subr.mxu0 0.0
      %213 = vmatpush2.msra.mxu0 %v176
      %214 = vmatprep.subr.mxu0 0.0
      %215 = vmatpush2.msra.mxu0 %v175
      %216 = vmatprep.subr.mxu0 0.0
      %217 = vmatpush2.msra.mxu0 %v174
      %218 = vmatprep.subr.mxu0 0.0
      %219 = vmatpush2.msra.mxu0 %v173
      %220 = vmatprep.subr.mxu0 0.0
      %221 = vmatpush2.msra.mxu0 %v172
      %222 = vmatprep.subr.mxu0 0.0
      %223 = vmatpush2.msra.mxu0 %v171
      %224 = vmatprep.subr.mxu0 0.0
      %225 = vmatpush2.msra.mxu0 %v170
      %226 = vmatprep.subr.mxu0 0.0
      %227 = vmatpush2.msra.mxu0 %v169
      %228 = vmatprep.subr.mxu0 0.0
      %229 = vmatpush2.msra.mxu0 %v168
      %230 = vmatprep.subr.mxu0 0.0
      %231 = vmatpush2.msra.mxu0 %v167
      %232 = vmatprep.subr.mxu0 0.0
      %233 = vmatpush2.msra.mxu0 %v166
      %234 = vmatprep.subr.mxu0 0.0
      %235 = vmatpush2.msra.mxu0 %v165
      %236 = vmatprep.subr.mxu0 0.0
      %237 = vmatpush2.msra.mxu0 %v164
      %238 = vmatprep.subr.mxu0 0.0
      %239 = vmatpush2.msra.mxu0 %v163
      %240 = vmatprep.subr.mxu0 0.0
      %241 = vmatpush2.msra.mxu0 %v162
      %242 = vmatprep.mubr.f32.mxu0 %v145
      %243 = vmatmul.mubr.f32.gmra.mxu0 %v144
      %v244 = vpop.f32.mrf.mxu0
      %v245 = vadd.f32 0.0, %v244
      %v246 = vpop.f32.mrf.mxu0
      %247 = vdwg.mxu0
      %v249 = vrot.slane %v245, 7
      %250 = vrot.lane.b32.xlu0 %v249, 88
      %v251 = vpop.permute.xlu0 %250
      %vm253 = vcmask 1040384
      %v254 = vsel %vm253, 0.0, %v251
      %v255 = vadd.f32 %v245, %v254
      %v256 = vadd.f32 %v251, 0.0
      %vm257 = vcmask 326656
      %258 = vst.msk [vmem:[%s143] sm:$0xff] %vm257, %v255
      %vm259 = vcmask 319488
      %260 = vst.msk [vmem:[%s143 + $0x8] sm:$0x1] %vm259, %v256
      %p261 = scmp.lt.s32.totalorder %s13, 1
      %s262 = scalar_select %p261, %s13, 1
      %s263 = smul.addr %s262, 2
      %s264 = smul.addr %s263, 8
      %s265 = scalar_lea.vmem %s2, %s264
      // Predicated region
      $region29: #{tpu_custom_call.1} parent=27 // pred_check
        %p266 = pneg %p78
      $region30: #{tpu_custom_call.1} parent=27 // pred_check_branch
        %268 = sbr.rel (%p266) target = $region32
      $region31: #{tpu_custom_call.1} parent=27 // pred_region
        _
      $region32: #{tpu_custom_call.1} parent=27 // pred_fallthru
        _
    $region28: #{tpu_custom_call.1} parent=5 // pred_fallthru
      _
    %p269 = scmp.le.s32.totalorder 2, %s8
    // Predicated region
    $region33: #{tpu_custom_call.1} parent=5 // pred_check
      %p270 = pneg %p269
    $region34: #{tpu_custom_call.1} parent=5 // pred_check_branch
      %272 = sbr.rel (%p270) target = $region36
    $region35: #{tpu_custom_call.1} parent=5 // pred_region
      %s273 = ssub.s32 %s8, 2
      // Predicated region
      $region37: #{tpu_custom_call.1} parent=35 // pred_check
        %p274 = pneg %p84
      $region38: #{tpu_custom_call.1} parent=35 // pred_check_branch
        %276 = sbr.rel (%p274) target = $region40
      $region39: #{tpu_custom_call.1} parent=35 // pred_region
        %p277 = scmp.lt.s32.totalorder %s14, 1
        %s278 = scalar_select %p277, %s14, 1
        %s279 = smul.addr %s278, 2
        %s280 = smul.addr %s279, 8
        %s281 = scalar_lea.vmem %s2, %s280
      $region40: #{tpu_custom_call.1} parent=35 // pred_fallthru
        _
    $region36: #{tpu_custom_call.1} parent=5 // pred_fallthru
      _
  $region6: #{tpu_custom_call.1} parent=0 // loop_footer
    %s12 = sadd.s32 1, %s8
  $region7: #{tpu_custom_call.1} parent=0 // loop_footer_branch
    %7 = sbr.rel target = $region3
  $region8: #{tpu_custom_call.1} parent=0 // loop_exit
    _

</llo_original>
